<compile_context>
chip_gen: v7x
topology: tpu7x:2x2x1
jax: 0.10.0
libtpu: 0.0.40
codegen_flags: <defaults>
</compile_context>

<pallas_src>
import functools

import jax
import jax.numpy as jnp
from jax.experimental import pallas as pl
from jax.experimental.pallas import tpu as pltpu


# ---------------------------------------------------------------------------
# Small helpers
# ---------------------------------------------------------------------------
def _round_up(a, b):
    return (a + b - 1) // b * b


_TARGET_BLOCK_BYTES = 1 << 20   # ~1 MiB per input block per step


def _pick_tile_rows(total_rows, bytes_per_row):
    """Row-tile: multiple of 8, big enough to amortize per-step overhead."""
    rows_cap = max(8, int(_TARGET_BLOCK_BYTES // max(int(bytes_per_row), 1)) // 8 * 8)
    return int(min(_round_up(total_rows, 8), rows_cap))


def _vmem_limit(block_bytes):
    # double-buffered inputs + headroom, clamped to a safe scoped-VMEM range.
    return int(min(100 * 2**20, max(16 * 2**20, 4 * int(block_bytes))))


# ---------------------------------------------------------------------------
# In-kernel helpers (all operate on lane-dense 2-D tiles)
# ---------------------------------------------------------------------------
def _shift(x, k):
    """result[..., i] = x[..., (i + k) % L] — lane rotate on the XLU."""
    axis = x.ndim - 1                      # pltpu.roll needs a non-negative axis
    length = x.shape[axis]
    return pltpu.roll(x, length - k, axis=axis)


def _flat_diffs(x, w, grad):
    """1st/2nd finite differences along the flattened (lane) axis.

    Positions whose shifted source crosses an image-row / image / padding
    boundary hold garbage and are zeroed later by the hoisted lane masks.
    """
    if grad == 1:
        d_x = _shift(x, 1) - x                            # flow[h, w+1] - flow[h, w]
        d_y = _shift(x, w) - x                            # flow[h+1, w] - flow[h, w]
    else:  # grad == 2
        d_x = _shift(x, 2) - 2.0 * _shift(x, 1) + x       # 2nd diff along W
        d_y = _shift(x, 2 * w) - 2.0 * _shift(x, w) + x   # 2nd diff along H
    return d_x, d_y


def _fold_lanes(x, lanes=128):
    """Sum lane-groups of 128 with whole-vreg adds (no XLU)."""
    cols = x.shape[-1]
    acc = x[..., :lanes]
    for k in range(1, cols // lanes):
        acc = acc + x[..., k * lanes:(k + 1) * lanes]
    return acc


def _fold_sublanes(x, sub=8):
    """Sum sublane-groups of 8 with whole-vreg adds (no XLU)."""
    rows = x.shape[0]
    acc = x[:sub]
    for j in range(1, rows // sub):
        acc = acc + x[j * sub:(j + 1) * sub]
    return acc


def _sum_lane_segments(x, seg):
    """Sum lane segments of width `seg` (seg % 128 == 0): channel sums."""
    cols = x.shape[-1]
    acc = x[..., :seg]
    for k in range(1, cols // seg):
        acc = acc + x[..., k * seg:(k + 1) * seg]
    return acc


# ---------------------------------------------------------------------------
# Kernels: one scalar partial sum per grid step ("parallel" batch axis)
# ---------------------------------------------------------------------------
def _plain_kernel(flow_ref, mx_ref, my_ref, out_ref, *, w, grad):
    # flow_ref: (row_tile, HWp) — rows are (n, c) images, lane-dense.
    x = flow_ref[...].astype(jnp.float32)
    d_x, d_y = _flat_diffs(x, w, grad)
    fx = _fold_sublanes(jnp.abs(d_x))                  # (8, HWp), pure vreg adds
    fy = _fold_sublanes(jnp.abs(d_y))
    # masks carry the {0,1} edge pattern * 1/(4*count); (1, HWp) broadcast.
    contrib = fx * mx_ref[...] + fy * my_ref[...]
    out_ref[0, 0] = jnp.sum(_fold_lanes(contrib))      # single small XLU reduce


def _ba_kernel(flow_ref, img_ref, mx_ref, my_ref, out_ref, *,
               w, grad, hwp, neg_alpha_over_ci):
    # flow_ref: (b_tile, C*HWp); img_ref: (b_tile, Ci*HWp) — rows are batches.
    x = flow_ref[...].astype(jnp.float32)
    img = img_ref[...].astype(jnp.float32)

    d_x, d_y = _flat_diffs(x, w, grad)
    i_dx, i_dy = _flat_diffs(img, w, 1)

    # Channel sums via vreg-aligned static lane slices (HWp % 128 == 0).
    sfx = _sum_lane_segments(jnp.abs(d_x), hwp)        # (b_tile, HWp)
    sfy = _sum_lane_segments(jnp.abs(d_y), hwp)
    six = _sum_lane_segments(jnp.abs(i_dx), hwp)
    siy = _sum_lane_segments(jnp.abs(i_dy), hwp)

    # Edge weights exp(-alpha * mean_c |dI|); alpha/Ci folded, exp on the EUP.
    w_x = jnp.exp(six * neg_alpha_over_ci)
    w_y = jnp.exp(siy * neg_alpha_over_ci)

    contrib = w_x * sfx * mx_ref[...] + w_y * sfy * my_ref[...]
    out_ref[0, 0] = jnp.sum(_fold_lanes(_fold_sublanes(contrib)))


# ---------------------------------------------------------------------------
# Wrapper
# ---------------------------------------------------------------------------
def _make_masks(h, w, hwp, grad, scale_x, scale_y):
    """Hoisted lane masks with all constant scalings folded in (built once)."""
    lane = jnp.arange(hwp, dtype=jnp.int32)
    col = lane % w
    row = lane // w
    valid_x = (col < (w - grad)) & (row < h)     # also kills lane padding
    valid_y = row < (h - grad)
    mask_x = (valid_x.astype(jnp.float32) * scale_x).reshape(1, hwp)
    mask_y = (valid_y.astype(jnp.float32) * scale_y).reshape(1, hwp)
    return mask_x, mask_y


def spatial_smooth(flow, image=None, *, grad=1, boundary_awareness=False,
                   boundary_alpha=10.0):
    assert grad in (1, 2)
    n, c, h, w = flow.shape
    # Degenerate spatial dims would make the reference mean() a NaN anyway.
    assert h > grad and w > grad, "spatial dims must exceed the gradient order"

    hw = h * w
    hwp = _round_up(hw, 128)

    # All /2, mean, /2 constants folded into one scale per direction.
    scale_x = 1.0 / (4.0 * n * c * h * (w - grad))
    scale_y = 1.0 / (4.0 * n * c * (h - grad) * w)
    mask_x, mask_y = _make_masks(h, w, hwp, grad, scale_x, scale_y)
    mask_spec = pl.BlockSpec((1, hwp), lambda i: (0, 0))      # resident, loaded once
    out_spec = pl.BlockSpec((1, 1), lambda i: (i, 0),
                            memory_space=pltpu.MemorySpace.SMEM)

    if boundary_awareness:
        assert image is not None
        # grad=2 + boundary awareness is shape-inconsistent in the reference
        # PyTorch module as well; only grad=1 is supported here.
        assert grad == 1
        ni, ci, hi, wi = image.shape
        assert (ni, hi, wi) == (n, h, w)

        # Lane-dense, channel-segmented layout: rows = batches.
        flow3 = flow.reshape(n, c, hw)
        img3 = image.reshape(n, ci, hw)
        if hwp != hw:
            flow3 = jnp.pad(flow3, ((0, 0), (0, 0), (0, hwp - hw)))
            img3 = jnp.pad(img3, ((0, 0), (0, 0), (0, hwp - hw)))
        flow2 = flow3.reshape(n, c * hwp)
        img2 = img3.reshape(n, ci * hwp)

        bytes_per_row = (c * hwp * flow2.dtype.itemsize
                         + ci * hwp * img2.dtype.itemsize)
        b_tile = _pick_tile_rows(n, bytes_per_row)
        n_pad = _round_up(n, b_tile)
        if n_pad != n:   # zero batches contribute exactly 0 to the sums
            flow2 = jnp.pad(flow2, ((0, n_pad - n), (0, 0)))
            img2 = jnp.pad(img2, ((0, n_pad - n), (0, 0)))
        g = n_pad // b_tile
        block_bytes = b_tile * bytes_per_row

        kern = functools.partial(
            _ba_kernel, w=w, grad=grad, hwp=hwp,
            neg_alpha_over_ci=-float(boundary_alpha) / float(ci))
        partials = pl.pallas_call(
            kern,
            out_shape=jax.ShapeDtypeStruct((g, 1), jnp.float32),
            grid_spec=pltpu.PrefetchScalarGridSpec(
                num_scalar_prefetch=0,
                grid=(g,),
                in_specs=[pl.BlockSpec((b_tile, c * hwp), lambda i: (i, 0)),
                          pl.BlockSpec((b_tile, ci * hwp), lambda i: (i, 0)),
                          mask_spec, mask_spec],
                out_specs=out_spec),
            compiler_params=pltpu.CompilerParams(
                dimension_semantics=("parallel",),
                vmem_limit_bytes=_vmem_limit(block_bytes)),
        )(flow2, img2, mask_x, mask_y)
    else:
        # Fully dense layout: rows = (n, c) pairs, lanes = flattened pixels.
        flow2 = flow.reshape(n * c, hw)
        if hwp != hw:
            flow2 = jnp.pad(flow2, ((0, 0), (0, hwp - hw)))
        rows = n * c
        bytes_per_row = hwp * flow2.dtype.itemsize
        row_tile = _pick_tile_rows(rows, bytes_per_row)
        rows_pad = _round_up(rows, row_tile)
        if rows_pad != rows:   # zero rows contribute exactly 0 to the sums
            flow2 = jnp.pad(flow2, ((0, rows_pad - rows), (0, 0)))
        g = rows_pad // row_tile
        block_bytes = row_tile * bytes_per_row

        kern = functools.partial(_plain_kernel, w=w, grad=grad)
        partials = pl.pallas_call(
            kern,
            out_shape=jax.ShapeDtypeStruct((g, 1), jnp.float32),
            grid_spec=pltpu.PrefetchScalarGridSpec(
                num_scalar_prefetch=0,
                grid=(g,),
                in_specs=[pl.BlockSpec((row_tile, hwp), lambda i: (i, 0)),
                          mask_spec, mask_spec],
                out_specs=out_spec),
            compiler_params=pltpu.CompilerParams(
                dimension_semantics=("parallel",),
                vmem_limit_bytes=_vmem_limit(block_bytes)),
        )(flow2, mask_x, mask_y)

    # Tiny per-block partial-sum reduction finished in JAX.
    return jnp.sum(partials)


# ---------------------------------------------------------------------------
# Pure-JAX reference (mirrors the PyTorch module) for a sanity check.
# ---------------------------------------------------------------------------
def _finite_diffs_ref(x):
    d_dx = x[:, :, :, 1:] - x[:, :, :, :-1]   # diff along W
    d_dy = x[:, :, 1:, :] - x[:, :, :-1, :]   # diff along H
    return d_dx, d_dy


def _ref_spatial_smooth(flow, image=None, *, grad=1, boundary_awareness=False,
                        boundary_alpha=10.0):
    dx, dy = _finite_diffs_ref(flow.astype(jnp.float32))
    if grad == 1:
        final_x, final_y = jnp.abs(dx), jnp.abs(dy)
    else:
        dx2, _ = _finite_diffs_ref(dx)
        _, dy2 = _finite_diffs_ref(dy)
        final_x, final_y = jnp.abs(dx2), jnp.abs(dy2)
    if boundary_awareness:
        img_dx, img_dy = _finite_diffs_ref(image.astype(jnp.float32))
        wx = jnp.exp(-jnp.mean(jnp.abs(img_dx), axis=1, keepdims=True) * boundary_alpha)
        wy = jnp.exp(-jnp.mean(jnp.abs(img_dy), axis=1, keepdims=True) * boundary_alpha)
        loss_x = wx * final_x / 2.0
        loss_y = wy * final_y / 2.0
    else:
        loss_x = final_x / 2.0
        loss_y = final_y / 2.0
    return jnp.mean(loss_x) / 2.0 + jnp.mean(loss_y) / 2.0


if __name__ == "__main__":
    key = jax.random.PRNGKey(0)
    k_flow, k_img = jax.random.split(key)
    # flow: (N=2, C=2, H=16, W=16); image: (N=2, Ci=3, H=16, W=16)
    flow = jax.random.normal(k_flow, (2, 2, 16, 16), dtype=jnp.float32)
    image = jax.random.uniform(k_img, (2, 3, 16, 16), dtype=jnp.float32)

    # Config 1: grad=1 with boundary awareness (SpatialSmooth(1, True)).
    out1 = spatial_smooth(flow, image, grad=1, boundary_awareness=True,
                          boundary_alpha=10.0)
    jax.block_until_ready(out1)
    ref1 = _ref_spatial_smooth(flow, image, grad=1, boundary_awareness=True,
                               boundary_alpha=10.0)
    assert jnp.allclose(out1, ref1, rtol=1e-5, atol=1e-6), (out1, ref1)

    # Config 2: grad=2 without boundary awareness (SpatialSmooth(2, False)).
    out2 = spatial_smooth(flow, grad=2, boundary_awareness=False)
    jax.block_until_ready(out2)
    ref2 = _ref_spatial_smooth(flow, grad=2, boundary_awareness=False)
    assert jnp.allclose(out2, ref2, rtol=1e-5, atol=1e-6), (out2, ref2)

    # Config 3: grad=1 without boundary awareness (SpatialSmooth(1, False)).
    out3 = spatial_smooth(flow, grad=1, boundary_awareness=False)
    jax.block_until_ready(out3)
    ref3 = _ref_spatial_smooth(flow, grad=1, boundary_awareness=False)
    assert jnp.allclose(out3, ref3, rtol=1e-5, atol=1e-6), (out3, ref3)

    print("KERNEL_OK")
</pallas_src>

<mosaic_0001>
module attributes {stable_mosaic.version = 11 : i64} {
  func.func @_ba_kernel(%arg0: i32, %arg1: memref<8x512xf32, #tpu.memory_space<vmem>>, %arg2: memref<8x768xf32, #tpu.memory_space<vmem>>, %arg3: memref<1x256xf32, #tpu.memory_space<vmem>>, %arg4: memref<1x256xf32, #tpu.memory_space<vmem>>, %arg5: memref<1x1xf32, #tpu.memory_space<smem>>) attributes {dimension_semantics = [#tpu.dimension_semantics<parallel>], iteration_bounds = array<i64: 1>, scalar_prefetch = 0 : i64, scratch_operands = 0 : i64, tpu.core_type = #tpu.core_type<tc>, window_params = [{transform_indices = @transform_0, window_bounds = array<i64: 8, 512>}, {transform_indices = @transform_1, window_bounds = array<i64: 8, 768>}, {pipeline_mode = #tpu.pipeline_mode<synchronous>, transform_indices = @transform_2, window_bounds = array<i64: 1, 256>}, {pipeline_mode = #tpu.pipeline_mode<synchronous>, transform_indices = @transform_3, window_bounds = array<i64: 1, 256>}, {transform_indices = @transform_4, window_bounds = array<i64: 1, 1>}]} {
    %c0 = arith.constant 0 : index
    %c0_0 = arith.constant 0 : index
    %0 = vector.load %arg1[%c0, %c0_0] : memref<8x512xf32, #tpu.memory_space<vmem>>, vector<8x512xf32>
    %c0_1 = arith.constant 0 : index
    %c0_2 = arith.constant 0 : index
    %1 = vector.load %arg2[%c0_1, %c0_2] : memref<8x768xf32, #tpu.memory_space<vmem>>, vector<8x768xf32>
    %c511_i32 = arith.constant 511 : i32
    %2 = tpu.dynamic_rotate %0 by %c511_i32 dim 1 : vector<8x512xf32>, i32 -> vector<8x512xf32>
    %3 = arith.subf %2, %0 : vector<8x512xf32>
    %c496_i32 = arith.constant 496 : i32
    %4 = tpu.dynamic_rotate %0 by %c496_i32 dim 1 : vector<8x512xf32>, i32 -> vector<8x512xf32>
    %5 = arith.subf %4, %0 : vector<8x512xf32>
    %c767_i32 = arith.constant 767 : i32
    %6 = tpu.dynamic_rotate %1 by %c767_i32 dim 1 : vector<8x768xf32>, i32 -> vector<8x768xf32>
    %7 = arith.subf %6, %1 : vector<8x768xf32>
    %c752_i32 = arith.constant 752 : i32
    %8 = tpu.dynamic_rotate %1 by %c752_i32 dim 1 : vector<8x768xf32>, i32 -> vector<8x768xf32>
    %9 = arith.subf %8, %1 : vector<8x768xf32>
    %10 = math.absf %3 : vector<8x512xf32>
    %11 = vector.extract_strided_slice %10 {offsets = [0, 0], sizes = [8, 256], strides = [1, 1]} : vector<8x512xf32> to vector<8x256xf32>
    %12 = vector.extract_strided_slice %10 {offsets = [0, 256], sizes = [8, 256], strides = [1, 1]} : vector<8x512xf32> to vector<8x256xf32>
    %13 = arith.addf %11, %12 : vector<8x256xf32>
    %14 = math.absf %5 : vector<8x512xf32>
    %15 = vector.extract_strided_slice %14 {offsets = [0, 0], sizes = [8, 256], strides = [1, 1]} : vector<8x512xf32> to vector<8x256xf32>
    %16 = vector.extract_strided_slice %14 {offsets = [0, 256], sizes = [8, 256], strides = [1, 1]} : vector<8x512xf32> to vector<8x256xf32>
    %17 = arith.addf %15, %16 : vector<8x256xf32>
    %18 = math.absf %7 : vector<8x768xf32>
    %19 = vector.extract_strided_slice %18 {offsets = [0, 0], sizes = [8, 256], strides = [1, 1]} : vector<8x768xf32> to vector<8x256xf32>
    %20 = vector.extract_strided_slice %18 {offsets = [0, 256], sizes = [8, 256], strides = [1, 1]} : vector<8x768xf32> to vector<8x256xf32>
    %21 = arith.addf %19, %20 : vector<8x256xf32>
    %22 = vector.extract_strided_slice %18 {offsets = [0, 512], sizes = [8, 256], strides = [1, 1]} : vector<8x768xf32> to vector<8x256xf32>
    %23 = arith.addf %21, %22 : vector<8x256xf32>
    %24 = math.absf %9 : vector<8x768xf32>
    %25 = vector.extract_strided_slice %24 {offsets = [0, 0], sizes = [8, 256], strides = [1, 1]} : vector<8x768xf32> to vector<8x256xf32>
    %26 = vector.extract_strided_slice %24 {offsets = [0, 256], sizes = [8, 256], strides = [1, 1]} : vector<8x768xf32> to vector<8x256xf32>
    %27 = arith.addf %25, %26 : vector<8x256xf32>
    %28 = vector.extract_strided_slice %24 {offsets = [0, 512], sizes = [8, 256], strides = [1, 1]} : vector<8x768xf32> to vector<8x256xf32>
    %29 = arith.addf %27, %28 : vector<8x256xf32>
    %cst = arith.constant -3.33333325 : f32
    %30 = vector.broadcast %cst : f32 to vector<8x256xf32>
    %31 = arith.mulf %23, %30 : vector<8x256xf32>
    %32 = math.exp %31 : vector<8x256xf32>
    %cst_3 = arith.constant -3.33333325 : f32
    %33 = vector.broadcast %cst_3 : f32 to vector<8x256xf32>
    %34 = arith.mulf %29, %33 : vector<8x256xf32>
    %35 = math.exp %34 : vector<8x256xf32>
    %36 = arith.mulf %32, %13 : vector<8x256xf32>
    %c0_4 = arith.constant 0 : index
    %c0_5 = arith.constant 0 : index
    %37 = vector.load %arg3[%c0_4, %c0_5] : memref<1x256xf32, #tpu.memory_space<vmem>>, vector<1x256xf32>
    %38 = vector.broadcast %37 : vector<1x256xf32> to vector<8x256xf32>
    %39 = arith.mulf %36, %38 : vector<8x256xf32>
    %40 = arith.mulf %35, %17 : vector<8x256xf32>
    %c0_6 = arith.constant 0 : index
    %c0_7 = arith.constant 0 : index
    %41 = vector.load %arg4[%c0_6, %c0_7] : memref<1x256xf32, #tpu.memory_space<vmem>>, vector<1x256xf32>
    %42 = vector.broadcast %41 : vector<1x256xf32> to vector<8x256xf32>
    %43 = arith.mulf %40, %42 : vector<8x256xf32>
    %44 = arith.addf %39, %43 : vector<8x256xf32>
    %45 = vector.extract_strided_slice %44 {offsets = [0, 0], sizes = [8, 128], strides = [1, 1]} : vector<8x256xf32> to vector<8x128xf32>
    %46 = vector.extract_strided_slice %44 {offsets = [0, 128], sizes = [8, 128], strides = [1, 1]} : vector<8x256xf32> to vector<8x128xf32>
    %47 = arith.addf %45, %46 : vector<8x128xf32>
    %48 = vector.shape_cast %47 : vector<8x128xf32> to vector<1x8x128xf32>
    %cst_8 = arith.constant dense<0.000000e+00> : vector<1xf32>
    %49 = vector.multi_reduction <add>, %48, %cst_8 [1, 2] : vector<1x8x128xf32> to vector<1xf32>
    %50 = vector.shape_cast %49 : vector<1xf32> to vector<1x1x1xf32>
    %51 = vector.extract %50[0, 0, 0] : f32 from vector<1x1x1xf32>
    %c0_9 = arith.constant 0 : index
    %c0_10 = arith.constant 0 : index
    %52 = memref.load %arg5[%c0_9, %c0_10] : memref<1x1xf32, #tpu.memory_space<smem>>
    memref.store %51, %arg5[%c0_9, %c0_10] : memref<1x1xf32, #tpu.memory_space<smem>>
    return
  }
  func.func @transform_0(%arg0: i32) -> (i32, i32) {
    %c0_i32 = arith.constant 0 : i32
    %c0_i32_0 = arith.constant 0 : i32
    return %arg0, %c0_i32 : i32, i32
  }
  func.func @transform_1(%arg0: i32) -> (i32, i32) {
    %c0_i32 = arith.constant 0 : i32
    %c0_i32_0 = arith.constant 0 : i32
    return %arg0, %c0_i32 : i32, i32
  }
  func.func @transform_2(%arg0: i32) -> (i32, i32) {
    %c0_i32 = arith.constant 0 : i32
    %c0_i32_0 = arith.constant 0 : i32
    %c0_i32_1 = arith.constant 0 : i32
    return %c0_i32, %c0_i32_0 : i32, i32
  }
  func.func @transform_3(%arg0: i32) -> (i32, i32) {
    %c0_i32 = arith.constant 0 : i32
    %c0_i32_0 = arith.constant 0 : i32
    %c0_i32_1 = arith.constant 0 : i32
    return %c0_i32, %c0_i32_0 : i32, i32
  }
  func.func @transform_4(%arg0: i32) -> (i32, i32) {
    %c0_i32 = arith.constant 0 : i32
    %c0_i32_0 = arith.constant 0 : i32
    return %arg0, %c0_i32 : i32, i32
  }
}

</mosaic_0001>

<llo_original>
// kernel: tpu_custom_call.1
$region0: #{tpu_custom_call.1}
  #allocation0 [shape = 'u32[]', space=smem, size = 0x4, offset = 0x4, fixed_abs, tag = 'smem constant byte address 0x4 - core index']
  #allocation1 [shape = 'u32[144,128]{1,0:T(1,128)}', space=vmem, size = 0x12000, scoped, tag = 'internal scratch']
  %s0 = inlined_call_operand.hbm [shape: f32[8,512], index: 0, kind: input, shape index: {}]
  %s1 = inlined_call_operand.hbm [shape: f32[8,768], index: 1, kind: input, shape index: {}]
  %s2 = inlined_call_operand.vmem [shape: f32[1,256], index: 2, kind: input, shape index: {}]
  %s3 = inlined_call_operand.vmem [shape: f32[1,256], index: 3, kind: input, shape index: {}]
  %s4 = inlined_call_operand.hbm [shape: f32[1,1], index: 4, kind: output, shape index: {}]
  %s5 = sld [smem:[#allocation0]]
  $region34: #{tpu_custom_call.1} parent=0
    _
  %s7 = ssub.s32 1, %s5
  %s8 = scalar_select 0, %s7, %s5
  $region1: #{tpu_custom_call.1} parent=0
    #allocation2 [shape = 'u8[16384]{0}', space=vmem, size = 0x4000, scoped, tag = 'input window, operand 0, single buffered']
    #allocation3 [shape = 's32[1]{0}', space=sflag, size = 0x4, scoped, tag = 'scoped memory for tpu_custom_call.1']
    #allocation4 [shape = 's32[1]{0}', space=sflag, size = 0x4, scoped, tag = 'scoped memory for tpu_custom_call.1']
    #allocation5 [shape = 'u8[24576]{0}', space=vmem, size = 0x6000, scoped, tag = 'input window, operand 1, single buffered']
    #allocation6 [shape = 's32[1]{0}', space=sflag, size = 0x4, scoped, tag = 'scoped memory for tpu_custom_call.1']
    #allocation7 [shape = 'u8[512]{0}', space=smem, size = 0x200, scoped, tag = 'output window, operand 0, single buffered']
    %9 = vsyncpa [#allocation3], 0
    %10 = vsyncpa [#allocation6], 0
    %11 = vsyncpa [#allocation4], 0
    // Predicated region
    $region2: #{tpu_custom_call.1} parent=1 // pred_check
      _
    $region3: #{tpu_custom_call.1} parent=1 // pred_check_branch
      %13 = sbr.rel (0) target = $region5
    $region4: #{tpu_custom_call.1} parent=1 // pred_region
      %s15 = ssub.s32 512, 512
      %16 = vsyncadd [#allocation3], %s15
      %s18 = sshll.u32 [#allocation2], 4
      %s19 = int_to_ptr.vmem [resolvable:$true] %s18
      %21 = dma.hbm_to_vmem [thread:$0]  %s0, 512, %s19, [#allocation3]
    $region5: #{tpu_custom_call.1} parent=1 // pred_fallthru
      _
    // Predicated region
    $region6: #{tpu_custom_call.1} parent=1 // pred_check
      _
    $region7: #{tpu_custom_call.1} parent=1 // pred_check_branch
      %23 = sbr.rel (0) target = $region9
    $region8: #{tpu_custom_call.1} parent=1 // pred_region
      %s25 = ssub.s32 768, 768
      %26 = vsyncadd [#allocation6], %s25
      %s28 = sshll.u32 [#allocation5], 4
      %s29 = int_to_ptr.vmem [resolvable:$true] %s28
      %31 = dma.hbm_to_vmem [thread:$0]  %s1, 768, %s29, [#allocation6]
    $region9: #{tpu_custom_call.1} parent=1 // pred_fallthru
      _
    // Predicated region
    $region10: #{tpu_custom_call.1} parent=1 // pred_check
      _
    $region11: #{tpu_custom_call.1} parent=1 // pred_check_branch
      %33 = sbr.rel (0) target = $region13
    $region12: #{tpu_custom_call.1} parent=1 // pred_region
      _
    $region13: #{tpu_custom_call.1} parent=1 // pred_fallthru
      _
    // Predicated region
    $region14: #{tpu_custom_call.1} parent=1 // pred_check
      _
    $region15: #{tpu_custom_call.1} parent=1 // pred_check_branch
      %35 = sbr.rel (0) target = $region17
    $region16: #{tpu_custom_call.1} parent=1 // pred_region
      _
    $region17: #{tpu_custom_call.1} parent=1 // pred_fallthru
      _
    // Predicated region
    $region18: #{tpu_custom_call.1} parent=1 // pred_check
      _
    $region19: #{tpu_custom_call.1} parent=1 // pred_check_branch
      %37 = sbr.rel (0) target = $region21
    $region20: #{tpu_custom_call.1} parent=1 // pred_region
      %38 = dma.done [#allocation3], 512
    $region21: #{tpu_custom_call.1} parent=1 // pred_fallthru
      _
    // Predicated region
    $region22: #{tpu_custom_call.1} parent=1 // pred_check
      _
    $region23: #{tpu_custom_call.1} parent=1 // pred_check_branch
      %40 = sbr.rel (0) target = $region25
    $region24: #{tpu_custom_call.1} parent=1 // pred_region
      %41 = dma.done [#allocation6], 768
    $region25: #{tpu_custom_call.1} parent=1 // pred_fallthru
      _
    %v42 = vld [vmem:[#allocation2] sm:$0xff]
    %v43 = vld [vmem:[#allocation2 + $0x8] sm:$0xff]
    %v44 = vld [vmem:[#allocation2 + $0x10] sm:$0xff]
    %v45 = vld [vmem:[#allocation2 + $0x18] sm:$0xff]
    %v46 = vld [vmem:[#allocation5] sm:$0xff]
    %v47 = vld [vmem:[#allocation5 + $0x8] sm:$0xff]
    %v48 = vld [vmem:[#allocation5 + $0x10] sm:$0xff]
    %v49 = vld [vmem:[#allocation5 + $0x18] sm:$0xff]
    %v50 = vld [vmem:[#allocation5 + $0x20] sm:$0xff]
    %v51 = vld [vmem:[#allocation5 + $0x28] sm:$0xff]
    %52 = vrot.lane.b32.xlu0 %v42, 127
    %v53 = vpop.permute.xlu0 %52
    %54 = vrot.lane.b32.xlu0 %v43, 127
    %v55 = vpop.permute.xlu0 %54
    %56 = vrot.lane.b32.xlu0 %v44, 127
    %v57 = vpop.permute.xlu0 %56
    %58 = vrot.lane.b32.xlu0 %v45, 127
    %v59 = vpop.permute.xlu0 %58
    %v60 = vlaneseq
    %v61 = vand.u32 %v60, 127
    %vm62 = vcmp.lt.s32.totalorder %v61, 127
    %v63 = vsel %vm62, %v57, %v59
    %v64 = vsel %vm62, %v55, %v57
    %v65 = vsel %vm62, %v53, %v55
    %v66 = vsel %vm62, %v59, %v53
    %v67 = vsub.f32 %v65, %v42
    %v68 = vsub.f32 %v64, %v43
    %v69 = vsub.f32 %v63, %v44
    %v70 = vsub.f32 %v66, %v45
    %71 = vrot.lane.b32.xlu0 %v42, 112
    %v72 = vpop.permute.xlu0 %71
    %73 = vrot.lane.b32.xlu0 %v43, 112
    %v74 = vpop.permute.xlu0 %73
    %75 = vrot.lane.b32.xlu0 %v44, 112
    %v76 = vpop.permute.xlu0 %75
    %77 = vrot.lane.b32.xlu0 %v45, 112
    %v78 = vpop.permute.xlu0 %77
    %vm79 = vcmp.lt.s32.totalorder %v61, 112
    %v80 = vsel %vm79, %v76, %v78
    %v81 = vsel %vm79, %v74, %v76
    %v82 = vsel %vm79, %v72, %v74
    %v83 = vsel %vm79, %v78, %v72
    %v84 = vsub.f32 %v82, %v42
    %v85 = vsub.f32 %v81, %v43
    %v86 = vsub.f32 %v80, %v44
    %v87 = vsub.f32 %v83, %v45
    %88 = vrot.lane.b32.xlu0 %v46, 127
    %v89 = vpop.permute.xlu0 %88
    %90 = vrot.lane.b32.xlu0 %v47, 127
    %v91 = vpop.permute.xlu0 %90
    %92 = vrot.lane.b32.xlu0 %v48, 127
    %v93 = vpop.permute.xlu0 %92
    %94 = vrot.lane.b32.xlu0 %v49, 127
    %v95 = vpop.permute.xlu0 %94
    %96 = vrot.lane.b32.xlu0 %v50, 127
    %v97 = vpop.permute.xlu0 %96
    %98 = vrot.lane.b32.xlu0 %v51, 127
    %v99 = vpop.permute.xlu0 %98
    %v100 = vsel %vm62, %v97, %v99
    %v101 = vsel %vm62, %v95, %v97
    %v102 = vsel %vm62, %v93, %v95
    %v103 = vsel %vm62, %v91, %v93
    %v104 = vsel %vm62, %v89, %v91
    %v105 = vsel %vm62, %v99, %v89
    %v106 = vsub.f32 %v104, %v46
    %v107 = vsub.f32 %v103, %v47
    %v108 = vsub.f32 %v102, %v48
    %v109 = vsub.f32 %v101, %v49
    %v110 = vsub.f32 %v100, %v50
    %v111 = vsub.f32 %v105, %v51
    %112 = vrot.lane.b32.xlu0 %v46, 112
    %v113 = vpop.permute.xlu0 %112
    %114 = vrot.lane.b32.xlu0 %v47, 112
    %v115 = vpop.permute.xlu0 %114
    %116 = vrot.lane.b32.xlu0 %v48, 112
    %v117 = vpop.permute.xlu0 %116
    %118 = vrot.lane.b32.xlu0 %v49, 112
    %v119 = vpop.permute.xlu0 %118
    %120 = vrot.lane.b32.xlu0 %v50, 112
    %v121 = vpop.permute.xlu0 %120
    %122 = vrot.lane.b32.xlu0 %v51, 112
    %v123 = vpop.permute.xlu0 %122
    %v124 = vsel %vm79, %v121, %v123
    %v125 = vsel %vm79, %v119, %v121
    %v126 = vsel %vm79, %v117, %v119
    %v127 = vsel %vm79, %v115, %v117
    %v128 = vsel %vm79, %v113, %v115
    %v129 = vsel %vm79, %v123, %v113
    %v130 = vsub.f32 %v128, %v46
    %v131 = vsub.f32 %v127, %v47
    %v132 = vsub.f32 %v126, %v48
    %v133 = vsub.f32 %v125, %v49
    %v134 = vsub.f32 %v124, %v50
    %v135 = vsub.f32 %v129, %v51
    %v136 = vand.u32 2147483647, %v67
    %v137 = vand.u32 2147483647, %v68
    %v138 = vand.u32 2147483647, %v69
    %v139 = vand.u32 2147483647, %v70
    %v140 = vadd.f32 %v136, %v138
    %v141 = vadd.f32 %v137, %v139
    %v142 = vand.u32 2147483647, %v84
    %v143 = vand.u32 2147483647, %v85
    %v144 = vand.u32 2147483647, %v86
    %v145 = vand.u32 2147483647, %v87
    %v146 = vadd.f32 %v142, %v144
    %v147 = vadd.f32 %v143, %v145
    %v148 = vand.u32 2147483647, %v106
    %v149 = vand.u32 2147483647, %v107
    %v150 = vand.u32 2147483647, %v108
    %v151 = vand.u32 2147483647, %v109
    %v152 = vand.u32 2147483647, %v110
    %v153 = vand.u32 2147483647, %v111
    %v154 = vadd.f32 %v148, %v150
    %v155 = vadd.f32 %v149, %v151
    %v156 = vadd.f32 %v154, %v152
    %v157 = vadd.f32 %v155, %v153
    %v158 = vand.u32 2147483647, %v130
    %v159 = vand.u32 2147483647, %v131
    %v160 = vand.u32 2147483647, %v132
    %v161 = vand.u32 2147483647, %v133
    %v162 = vand.u32 2147483647, %v134
    %v163 = vand.u32 2147483647, %v135
    %v164 = vadd.f32 %v158, %v160
    %v165 = vadd.f32 %v159, %v161
    %v166 = vadd.f32 %v164, %v162
    %v167 = vadd.f32 %v165, %v163
    %v168 = vmul.f32 %v156, -3.3333333
    %v169 = vmul.f32 %v157, -3.3333333
    %v170 = vmul.f32 %v168, 1.442695
    %v171 = vpow.pop %v170
    %v172 = vmul.f32 %v169, 1.442695
    %v173 = vpow.pop %v172
    %v174 = vmul.f32 %v166, -3.3333333
    %v175 = vmul.f32 %v167, -3.3333333
    %v176 = vmul.f32 %v174, 1.442695
    %v177 = vpow.pop %v176
    %v178 = vmul.f32 %v175, 1.442695
    %v179 = vpow.pop %v178
    %v180 = vmul.f32 %v171, %v140
    %v181 = vmul.f32 %v173, %v141
    %v182 = vld [vmem:[%s2] sm:$0x3]
    %v184 = vlaneseq
    %v185 = vshrl.u32 %v184, 7
    %v186 = vsub.s32 0, %v185
    %v187 = vrot.slane %v182, %v186
    %v188 = vlaneseq
    %v189 = vshrl.u32 %v188, 7
    %v190 = vsub.s32 1, %v189
    %v191 = vrot.slane %v182, %v190
    %v194 = vmul.f32 %v180, %v187
    %v195 = vmul.f32 %v181, %v191
    %v196 = vmul.f32 %v177, %v146
    %v197 = vmul.f32 %v179, %v147
    %v198 = vld [vmem:[%s3] sm:$0x3]
    %v200 = vlaneseq
    %v201 = vshrl.u32 %v200, 7
    %v202 = vsub.s32 0, %v201
    %v203 = vrot.slane %v198, %v202
    %v204 = vlaneseq
    %v205 = vshrl.u32 %v204, 7
    %v206 = vsub.s32 1, %v205
    %v207 = vrot.slane %v198, %v206
    %v210 = vmul.f32 %v196, %v203
    %v211 = vmul.f32 %v197, %v207
    %v212 = vadd.f32 %v194, %v210
    %v213 = vadd.f32 %v195, %v211
    %v214 = vadd.f32 %v212, %v213
    %215 = vadd.xlane.f32.xlu0 %v214
    %v216 = vpop.xlane.xlu0 %215
    %v217 = vrot.slane %v216, 4
    %v218 = vadd.f32 %v216, %v217
    %v219 = vrot.slane %v218, 2
    %v220 = vadd.f32 %v218, %v219
    %v221 = vrot.slane %v220, 1
    %v222 = vadd.f32 %v220, %v221
    %s223 = vtos %v222
    %s224 = scalar_lea.smem [#allocation7], 0
    %225 = sst [smem:[%s224]] %s223
    // Predicated region
    $region26: #{tpu_custom_call.1} parent=1 // pred_check
      _
    $region27: #{tpu_custom_call.1} parent=1 // pred_check_branch
      %227 = sbr.rel (0) target = $region29
    $region28: #{tpu_custom_call.1} parent=1 // pred_region
      %s229 = ssub.s32 16, 16
      %230 = vsyncadd [#allocation4], %s229
      %233 = dma.smem_to_hbm [#allocation7], 16, %s4, [#allocation4]
    $region29: #{tpu_custom_call.1} parent=1 // pred_fallthru
      _
    // Predicated region
    $region30: #{tpu_custom_call.1} parent=1 // pred_check
      _
    $region31: #{tpu_custom_call.1} parent=1 // pred_check_branch
      %235 = sbr.rel (0) target = $region33
    $region32: #{tpu_custom_call.1} parent=1 // pred_region
      %236 = dma.done [#allocation4], 16
    $region33: #{tpu_custom_call.1} parent=1 // pred_fallthru
      _
    %237 = sfence
    %238 = vsyncpa [#allocation3], 1
    %239 = vsyncpa [#allocation6], 1
    %240 = vsyncpa [#allocation4], 1

</llo_original>
